<compile_context>
chip_gen: v5e
topology: v5e:2x2
jax: 0.10.0
libtpu: 0.0.40
codegen_flags: <defaults>
</compile_context>

<pallas_src>
import math

import jax
import jax.numpy as jnp
from jax.experimental import pallas as pl
from jax.experimental.pallas import tpu as pltpu

LOG_STD_MIN = -20.0
LOG_STD_MAX = 2.0
HALF_LOG_2PI = 0.5 * math.log(2.0 * math.pi)
LOG_2 = math.log(2.0)


def _round_up(x, m):
    return ((x + m - 1) // m) * m


def _policy_kernel(mult_ref, offset_ref,                  # SMEM scalars
                   obs_ref, eps_ref,                      # batch-tiled VMEM
                   w1_ref, b1_ref, w2_ref, b2_ref,        # resident weights
                   wl_ref, bl_ref,
                   out_ref):                              # lane-dense output
    action_dim = wl_ref.shape[1] // 2

    # ---- base MLP: Linear -> ReLU -> Linear -> ReLU -> Linear (fused head) --
    # bf16 MXU inputs, f32 accumulation; inter-layer activations held as bf16
    # only (halves VMEM spill / vld-vst pressure between matmuls).
    h1 = jnp.maximum(
        jnp.dot(obs_ref[...].astype(jnp.bfloat16), w1_ref[...],
                preferred_element_type=jnp.float32) + b1_ref[...],
        0.0).astype(jnp.bfloat16)
    h2 = jnp.maximum(
        jnp.dot(h1, w2_ref[...], preferred_element_type=jnp.float32)
        + b2_ref[...],
        0.0).astype(jnp.bfloat16)
    head = jnp.dot(h2, wl_ref[...],
                   preferred_element_type=jnp.float32) + bl_ref[...]
    mean = head[:, :action_dim]
    log_std_raw = head[:, action_dim:]

    # ---- log_std affine (Scalar modules) + clamp + std ----
    log_std = mult_ref[0] * log_std_raw + offset_ref[0]
    log_std = jnp.clip(log_std, LOG_STD_MIN, LOG_STD_MAX)
    std = jnp.exp(log_std)

    # ---- reparameterized sample + tanh squash ----
    # eps comes from the wrapper: jax.random.normal for rsample, zeros for
    # the deterministic path (action = tanh(mean) exactly).
    eps = eps_ref[...]
    pre_tanh = mean + std * eps
    action = jnp.tanh(pre_tanh)

    # ---- log prob of TransformedDistribution(Normal, TanhTransform) ----
    # Normal(mean, std).log_prob(pre_tanh) with (pre_tanh - mean)/std == eps.
    normal_lp = -0.5 * eps * eps - log_std - HALF_LOG_2PI
    # TanhTransform.log_abs_det_jacobian(x, y) = 2*(log2 - x - softplus(-2x))
    z = -2.0 * pre_tanh
    softplus_z = jnp.maximum(z, 0.0) + jnp.log1p(jnp.exp(-jnp.abs(z)))
    log_det = 2.0 * (LOG_2 - pre_tanh - softplus_z)
    lp = jnp.sum(normal_lp - log_det, axis=-1, keepdims=True)

    # ---- lane-dense output slab: [action | log_prob | unused pad lanes] ----
    out_ref[:, :action_dim] = action
    out_ref[:, action_dim:action_dim + 1] = lp


def init_policy_params(key, obs_dim, action_dim, hidden_sizes=(256, 256),
                       log_std_multiplier=1.0, log_std_offset=-1.0):
    """Synthetic init mirroring the PyTorch module's shapes.

    Weights stored (in, out) and cast to bfloat16 for the MXU; biases and the
    Scalar parameters stay float32.  Hidden layers use nn.Linear's default
    U(-1/sqrt(fan_in), 1/sqrt(fan_in)); the last layer uses xavier_uniform
    with gain=0.01 and zero bias (FullyConnectedNetwork default init).
    """
    params = {}
    dims = [obs_dim] + list(hidden_sizes)
    for i in range(len(hidden_sizes)):
        key, kw, kb = jax.random.split(key, 3)
        fan_in, fan_out = dims[i], dims[i + 1]
        bound = 1.0 / math.sqrt(fan_in)
        params[f"w{i+1}"] = jax.random.uniform(
            kw, (fan_in, fan_out), jnp.float32, -bound, bound
        ).astype(jnp.bfloat16)
        params[f"b{i+1}"] = jax.random.uniform(
            kb, (1, fan_out), jnp.float32, -bound, bound)
    key, kw = jax.random.split(key)
    fan_in, fan_out = dims[-1], 2 * action_dim
    a = 0.01 * math.sqrt(6.0 / (fan_in + fan_out))
    params["w_last"] = jax.random.uniform(
        kw, (fan_in, fan_out), jnp.float32, -a, a).astype(jnp.bfloat16)
    params["b_last"] = jnp.zeros((1, fan_out), jnp.float32)
    params["log_std_multiplier"] = jnp.array([log_std_multiplier], jnp.float32)
    params["log_std_offset"] = jnp.array([log_std_offset], jnp.float32)
    return params


def tanh_gaussian_policy_forward(observations, params, action_dim,
                                 deterministic=False, rng=None, noise=None,
                                 tile_b=1024):
    """Forward pass of TanhGaussianPolicy: returns (action, log_prob).

    `noise` (optional) is explicit N(0,1) reparameterization noise of shape
    (B, action_dim); otherwise it is drawn from `rng` (jax.random key).
    """
    B, obs_dim = observations.shape
    observations = observations.astype(jnp.float32)

    # ---- batch tiling: large tiles amortize per-grid-step overhead; for big
    # batches force >= 2 grid steps so the "parallel" axis can be sharded
    # across both v7x TensorCores (harmless extra step on v5e/v6e). ----
    b_pad8 = _round_up(max(B, 8), 8)
    n_steps = max(1, -(-b_pad8 // tile_b))
    if b_pad8 >= 512:
        n_steps = max(n_steps, 2)
    tile = _round_up(-(-b_pad8 // n_steps), 8)
    b_pad = tile * n_steps

    if b_pad != B:
        observations = jnp.pad(observations, ((0, b_pad - B), (0, 0)))

    # ---- reparameterization noise (jax.random, outside the kernel) ----
    if deterministic:
        eps = jnp.zeros((b_pad, action_dim), jnp.float32)
    else:
        if noise is None:
            if rng is None:
                rng = jax.random.PRNGKey(0)
            noise = jax.random.normal(rng, (B, action_dim), jnp.float32)
        eps = noise.astype(jnp.float32)
        if eps.shape[0] != b_pad:
            eps = jnp.pad(eps, ((0, b_pad - eps.shape[0]), (0, 0)))

    out_lanes = _round_up(action_dim + 1, 128)   # lane-dense output buffer

    smem = pl.BlockSpec(memory_space=pltpu.MemorySpace.SMEM)

    def resident(shape):   # whole-array block, VMEM-resident across steps
        return pl.BlockSpec(shape, lambda i: (0, 0))

    out = pl.pallas_call(
        _policy_kernel,
        out_shape=jax.ShapeDtypeStruct((b_pad, out_lanes), jnp.float32),
        grid=(b_pad // tile,),
        in_specs=[
            smem, smem,
            pl.BlockSpec((tile, obs_dim), lambda i: (i, 0)),
            pl.BlockSpec((tile, action_dim), lambda i: (i, 0)),
            resident(params["w1"].shape), resident(params["b1"].shape),
            resident(params["w2"].shape), resident(params["b2"].shape),
            resident(params["w_last"].shape), resident(params["b_last"].shape),
        ],
        out_specs=pl.BlockSpec((tile, out_lanes), lambda i: (i, 0)),
        compiler_params=pltpu.CompilerParams(
            dimension_semantics=("parallel",)),
    )(params["log_std_multiplier"], params["log_std_offset"],
      observations, eps,
      params["w1"], params["b1"], params["w2"], params["b2"],
      params["w_last"], params["b_last"])

    action = out[:B, :action_dim]
    log_prob = out[:B, action_dim]
    return action, log_prob


def _reference_forward(observations, params, action_dim, eps):
    """Pure-JAX reference (same bf16 MXU-input casts as the kernel)."""
    x = observations.astype(jnp.float32)
    h1 = jnp.maximum(jnp.dot(x.astype(jnp.bfloat16), params["w1"],
                             preferred_element_type=jnp.float32)
                     + params["b1"], 0.0).astype(jnp.bfloat16)
    h2 = jnp.maximum(jnp.dot(h1, params["w2"],
                             preferred_element_type=jnp.float32)
                     + params["b2"], 0.0).astype(jnp.bfloat16)
    head = jnp.dot(h2, params["w_last"],
                   preferred_element_type=jnp.float32) + params["b_last"]
    mean = head[:, :action_dim]
    log_std = (params["log_std_multiplier"][0] * head[:, action_dim:]
               + params["log_std_offset"][0])
    log_std = jnp.clip(log_std, LOG_STD_MIN, LOG_STD_MAX)
    std = jnp.exp(log_std)
    pre_tanh = mean + std * eps
    action = jnp.tanh(pre_tanh)
    normal_lp = -0.5 * eps * eps - log_std - HALF_LOG_2PI
    z = -2.0 * pre_tanh
    softplus_z = jnp.maximum(z, 0.0) + jnp.log1p(jnp.exp(-jnp.abs(z)))
    log_det = 2.0 * (LOG_2 - pre_tanh - softplus_z)
    lp = jnp.sum(normal_lp - log_det, axis=-1)
    return action, lp


if __name__ == "__main__":
    key = jax.random.PRNGKey(0)
    k_param, k_obs, k_eps = jax.random.split(key, 3)

    batch = 4
    obs_dim = 16
    action_dim = 8
    hidden_sizes = (256, 256)   # arch='256-256' (module default)

    params = init_policy_params(k_param, obs_dim, action_dim, hidden_sizes)
    observations = jax.random.normal(k_obs, (batch, obs_dim), jnp.float32)
    noise = jax.random.normal(k_eps, (batch, action_dim), jnp.float32)

    # stochastic forward (explicit noise so numerics can be cross-checked)
    action, log_prob = tanh_gaussian_policy_forward(
        observations, params, action_dim, deterministic=False, noise=noise)
    # deterministic forward (tanh(mean) path, eps == 0)
    action_det, log_prob_det = tanh_gaussian_policy_forward(
        observations, params, action_dim, deterministic=True)

    jax.block_until_ready((action, log_prob, action_det, log_prob_det))

    assert action.shape == (batch, action_dim)
    assert log_prob.shape == (batch,)
    assert action_det.shape == (batch, action_dim)
    assert log_prob_det.shape == (batch,)
    assert bool(jnp.all(jnp.isfinite(action)))
    assert bool(jnp.all(jnp.isfinite(log_prob)))
    assert bool(jnp.all(jnp.abs(action) <= 1.0))
    assert bool(jnp.all(jnp.abs(action_det) <= 1.0))

    # cross-check both paths against a pure-JAX reference
    ref_a, ref_lp = _reference_forward(observations, params, action_dim, noise)
    ref_a_det, ref_lp_det = _reference_forward(
        observations, params, action_dim, jnp.zeros_like(noise))
    assert bool(jnp.allclose(action, ref_a, atol=5e-2, rtol=5e-2))
    assert bool(jnp.allclose(log_prob, ref_lp, atol=5e-2, rtol=5e-2))
    assert bool(jnp.allclose(action_det, ref_a_det, atol=5e-2, rtol=5e-2))
    assert bool(jnp.allclose(log_prob_det, ref_lp_det, atol=5e-2, rtol=5e-2))

    print("KERNEL_OK")
</pallas_src>

<mosaic_0001>
module attributes {stable_mosaic.version = 11 : i64} {
  func.func @_policy_kernel(%arg0: i32, %arg1: memref<1xf32, #tpu.memory_space<smem>>, %arg2: memref<1xf32, #tpu.memory_space<smem>>, %arg3: memref<8x16xf32, #tpu.memory_space<vmem>>, %arg4: memref<8x8xf32, #tpu.memory_space<vmem>>, %arg5: memref<16x256xbf16, #tpu.memory_space<vmem>>, %arg6: memref<1x256xf32, #tpu.memory_space<vmem>>, %arg7: memref<256x256xbf16, #tpu.memory_space<vmem>>, %arg8: memref<1x256xf32, #tpu.memory_space<vmem>>, %arg9: memref<256x16xbf16, #tpu.memory_space<vmem>>, %arg10: memref<1x16xf32, #tpu.memory_space<vmem>>, %arg11: memref<8x128xf32, #tpu.memory_space<vmem>>) attributes {dimension_semantics = [#tpu.dimension_semantics<parallel>], iteration_bounds = array<i64: 1>, scalar_prefetch = 0 : i64, scratch_operands = 0 : i64, tpu.core_type = #tpu.core_type<tc>, window_params = [{transform_indices = @transform_0, window_bounds = array<i64: 1>}, {transform_indices = @transform_1, window_bounds = array<i64: 1>}, {transform_indices = @transform_2, window_bounds = array<i64: 8, 16>}, {transform_indices = @transform_3, window_bounds = array<i64: 8, 8>}, {pipeline_mode = #tpu.pipeline_mode<synchronous>, transform_indices = @transform_4, window_bounds = array<i64: 16, 256>}, {pipeline_mode = #tpu.pipeline_mode<synchronous>, transform_indices = @transform_5, window_bounds = array<i64: 1, 256>}, {pipeline_mode = #tpu.pipeline_mode<synchronous>, transform_indices = @transform_6, window_bounds = array<i64: 256, 256>}, {pipeline_mode = #tpu.pipeline_mode<synchronous>, transform_indices = @transform_7, window_bounds = array<i64: 1, 256>}, {pipeline_mode = #tpu.pipeline_mode<synchronous>, transform_indices = @transform_8, window_bounds = array<i64: 256, 16>}, {pipeline_mode = #tpu.pipeline_mode<synchronous>, transform_indices = @transform_9, window_bounds = array<i64: 1, 16>}, {transform_indices = @transform_10, window_bounds = array<i64: 8, 128>}]} {
    %c0 = arith.constant 0 : index
    %c0_0 = arith.constant 0 : index
    %0 = vector.load %arg3[%c0, %c0_0] : memref<8x16xf32, #tpu.memory_space<vmem>>, vector<8x16xf32>
    %1 = arith.truncf %0 : vector<8x16xf32> to vector<8x16xbf16>
    %c0_1 = arith.constant 0 : index
    %c0_2 = arith.constant 0 : index
    %2 = vector.load %arg5[%c0_1, %c0_2] : memref<16x256xbf16, #tpu.memory_space<vmem>>, vector<16x256xbf16>
    %cst = arith.constant dense<0.000000e+00> : vector<8x256xf32>
    %3 = tpu.matmul %1, %2, %cst {dimension_numbers = #tpu.dot_dimension_numbers<[1], [0], [0], [1], [0, 0, 1, 1], [], []>} : vector<8x16xbf16>, vector<16x256xbf16>, vector<8x256xf32> -> vector<8x256xf32>
    %c0_3 = arith.constant 0 : index
    %c0_4 = arith.constant 0 : index
    %4 = vector.load %arg6[%c0_3, %c0_4] : memref<1x256xf32, #tpu.memory_space<vmem>>, vector<1x256xf32>
    %5 = vector.broadcast %4 : vector<1x256xf32> to vector<8x256xf32>
    %6 = arith.addf %3, %5 : vector<8x256xf32>
    %cst_5 = arith.constant 0.000000e+00 : f32
    %7 = vector.broadcast %cst_5 : f32 to vector<8x256xf32>
    %8 = arith.maximumf %6, %7 : vector<8x256xf32>
    %9 = arith.truncf %8 : vector<8x256xf32> to vector<8x256xbf16>
    %c0_6 = arith.constant 0 : index
    %c0_7 = arith.constant 0 : index
    %10 = vector.load %arg7[%c0_6, %c0_7] : memref<256x256xbf16, #tpu.memory_space<vmem>>, vector<256x256xbf16>
    %cst_8 = arith.constant dense<0.000000e+00> : vector<8x256xf32>
    %11 = tpu.matmul %9, %10, %cst_8 {dimension_numbers = #tpu.dot_dimension_numbers<[1], [0], [0], [1], [0, 0, 1, 1], [], []>} : vector<8x256xbf16>, vector<256x256xbf16>, vector<8x256xf32> -> vector<8x256xf32>
    %c0_9 = arith.constant 0 : index
    %c0_10 = arith.constant 0 : index
    %12 = vector.load %arg8[%c0_9, %c0_10] : memref<1x256xf32, #tpu.memory_space<vmem>>, vector<1x256xf32>
    %13 = vector.broadcast %12 : vector<1x256xf32> to vector<8x256xf32>
    %14 = arith.addf %11, %13 : vector<8x256xf32>
    %cst_11 = arith.constant 0.000000e+00 : f32
    %15 = vector.broadcast %cst_11 : f32 to vector<8x256xf32>
    %16 = arith.maximumf %14, %15 : vector<8x256xf32>
    %17 = arith.truncf %16 : vector<8x256xf32> to vector<8x256xbf16>
    %c0_12 = arith.constant 0 : index
    %c0_13 = arith.constant 0 : index
    %18 = vector.load %arg9[%c0_12, %c0_13] : memref<256x16xbf16, #tpu.memory_space<vmem>>, vector<256x16xbf16>
    %cst_14 = arith.constant dense<0.000000e+00> : vector<8x16xf32>
    %19 = tpu.matmul %17, %18, %cst_14 {dimension_numbers = #tpu.dot_dimension_numbers<[1], [0], [0], [1], [0, 0, 1, 1], [], []>} : vector<8x256xbf16>, vector<256x16xbf16>, vector<8x16xf32> -> vector<8x16xf32>
    %c0_15 = arith.constant 0 : index
    %c0_16 = arith.constant 0 : index
    %20 = vector.load %arg10[%c0_15, %c0_16] : memref<1x16xf32, #tpu.memory_space<vmem>>, vector<1x16xf32>
    %21 = vector.broadcast %20 : vector<1x16xf32> to vector<8x16xf32>
    %22 = arith.addf %19, %21 : vector<8x16xf32>
    %23 = vector.extract_strided_slice %22 {offsets = [0, 0], sizes = [8, 8], strides = [1, 1]} : vector<8x16xf32> to vector<8x8xf32>
    %24 = vector.extract_strided_slice %22 {offsets = [0, 8], sizes = [8, 8], strides = [1, 1]} : vector<8x16xf32> to vector<8x8xf32>
    %c0_17 = arith.constant 0 : index
    %25 = memref.load %arg1[%c0_17] : memref<1xf32, #tpu.memory_space<smem>>
    %26 = vector.broadcast %25 : f32 to vector<8x8xf32>
    %27 = arith.mulf %26, %24 : vector<8x8xf32>
    %c0_18 = arith.constant 0 : index
    %28 = memref.load %arg2[%c0_18] : memref<1xf32, #tpu.memory_space<smem>>
    %29 = vector.broadcast %28 : f32 to vector<8x8xf32>
    %30 = arith.addf %27, %29 : vector<8x8xf32>
    %cst_19 = arith.constant -2.000000e+01 : f32
    %cst_20 = arith.constant 2.000000e+00 : f32
    %31 = vector.broadcast %cst_19 : f32 to vector<8x8xf32>
    %32 = arith.maximumf %31, %30 : vector<8x8xf32>
    %33 = vector.broadcast %cst_20 : f32 to vector<8x8xf32>
    %34 = arith.minimumf %33, %32 : vector<8x8xf32>
    %35 = math.exp %34 : vector<8x8xf32>
    %c0_21 = arith.constant 0 : index
    %c0_22 = arith.constant 0 : index
    %36 = vector.load %arg4[%c0_21, %c0_22] : memref<8x8xf32, #tpu.memory_space<vmem>>, vector<8x8xf32>
    %37 = arith.mulf %35, %36 : vector<8x8xf32>
    %38 = arith.addf %23, %37 : vector<8x8xf32>
    %39 = math.tanh %38 : vector<8x8xf32>
    %cst_23 = arith.constant -5.000000e-01 : f32
    %40 = vector.broadcast %cst_23 : f32 to vector<8x8xf32>
    %41 = arith.mulf %40, %36 : vector<8x8xf32>
    %42 = arith.mulf %41, %36 : vector<8x8xf32>
    %43 = arith.subf %42, %34 : vector<8x8xf32>
    %cst_24 = arith.constant 0.918938517 : f32
    %44 = vector.broadcast %cst_24 : f32 to vector<8x8xf32>
    %45 = arith.subf %43, %44 : vector<8x8xf32>
    %cst_25 = arith.constant -2.000000e+00 : f32
    %46 = vector.broadcast %cst_25 : f32 to vector<8x8xf32>
    %47 = arith.mulf %46, %38 : vector<8x8xf32>
    %cst_26 = arith.constant 0.000000e+00 : f32
    %48 = vector.broadcast %cst_26 : f32 to vector<8x8xf32>
    %49 = arith.maximumf %47, %48 : vector<8x8xf32>
    %50 = math.absf %47 : vector<8x8xf32>
    %cst_27 = arith.constant 0.000000e+00 : f32
    %51 = vector.broadcast %cst_27 : f32 to vector<8x8xf32>
    %52 = arith.subf %51, %50 : vector<8x8xf32>
    %53 = math.exp %52 : vector<8x8xf32>
    %54 = math.log1p %53 : vector<8x8xf32>
    %55 = arith.addf %49, %54 : vector<8x8xf32>
    %cst_28 = arith.constant 0.693147182 : f32
    %56 = vector.broadcast %cst_28 : f32 to vector<8x8xf32>
    %57 = arith.subf %56, %38 : vector<8x8xf32>
    %58 = arith.subf %57, %55 : vector<8x8xf32>
    %cst_29 = arith.constant 2.000000e+00 : f32
    %59 = vector.broadcast %cst_29 : f32 to vector<8x8xf32>
    %60 = arith.mulf %59, %58 : vector<8x8xf32>
    %61 = arith.subf %45, %60 : vector<8x8xf32>
    %cst_30 = arith.constant dense<0.000000e+00> : vector<8xf32>
    %62 = vector.multi_reduction <add>, %61, %cst_30 [1] : vector<8x8xf32> to vector<8xf32>
    %63 = vector.shape_cast %62 : vector<8xf32> to vector<8x1xf32>
    %c0_31 = arith.constant 0 : index
    %c0_32 = arith.constant 0 : index
    %64 = vector.load %arg11[%c0_31, %c0_32] : memref<8x128xf32, #tpu.memory_space<vmem>>, vector<8x8xf32>
    tpu.vector_store %arg11[%c0_31, %c0_32], %39 {strides = array<i32>} : memref<8x128xf32, #tpu.memory_space<vmem>>, vector<8x8xf32>,
    %c0_33 = arith.constant 0 : index
    %c8 = arith.constant 8 : index
    %65 = vector.load %arg11[%c0_33, %c8] : memref<8x128xf32, #tpu.memory_space<vmem>>, vector<8x1xf32>
    tpu.vector_store %arg11[%c0_33, %c8], %63 {strides = array<i32>} : memref<8x128xf32, #tpu.memory_space<vmem>>, vector<8x1xf32>,
    return
  }
  func.func @transform_0(%arg0: i32) -> i32 {
    %c0_i32 = arith.constant 0 : i32
    %c0_i32_0 = arith.constant 0 : i32
    return %c0_i32 : i32
  }
  func.func @transform_1(%arg0: i32) -> i32 {
    %c0_i32 = arith.constant 0 : i32
    %c0_i32_0 = arith.constant 0 : i32
    return %c0_i32 : i32
  }
  func.func @transform_2(%arg0: i32) -> (i32, i32) {
    %c0_i32 = arith.constant 0 : i32
    %c0_i32_0 = arith.constant 0 : i32
    return %arg0, %c0_i32 : i32, i32
  }
  func.func @transform_3(%arg0: i32) -> (i32, i32) {
    %c0_i32 = arith.constant 0 : i32
    %c0_i32_0 = arith.constant 0 : i32
    return %arg0, %c0_i32 : i32, i32
  }
  func.func @transform_4(%arg0: i32) -> (i32, i32) {
    %c0_i32 = arith.constant 0 : i32
    %c0_i32_0 = arith.constant 0 : i32
    %c0_i32_1 = arith.constant 0 : i32
    return %c0_i32, %c0_i32_0 : i32, i32
  }
  func.func @transform_5(%arg0: i32) -> (i32, i32) {
    %c0_i32 = arith.constant 0 : i32
    %c0_i32_0 = arith.constant 0 : i32
    %c0_i32_1 = arith.constant 0 : i32
    return %c0_i32, %c0_i32_0 : i32, i32
  }
  func.func @transform_6(%arg0: i32) -> (i32, i32) {
    %c0_i32 = arith.constant 0 : i32
    %c0_i32_0 = arith.constant 0 : i32
    %c0_i32_1 = arith.constant 0 : i32
    return %c0_i32, %c0_i32_0 : i32, i32
  }
  func.func @transform_7(%arg0: i32) -> (i32, i32) {
    %c0_i32 = arith.constant 0 : i32
    %c0_i32_0 = arith.constant 0 : i32
    %c0_i32_1 = arith.constant 0 : i32
    return %c0_i32, %c0_i32_0 : i32, i32
  }
  func.func @transform_8(%arg0: i32) -> (i32, i32) {
    %c0_i32 = arith.constant 0 : i32
    %c0_i32_0 = arith.constant 0 : i32
    %c0_i32_1 = arith.constant 0 : i32
    return %c0_i32, %c0_i32_0 : i32, i32
  }
  func.func @transform_9(%arg0: i32) -> (i32, i32) {
    %c0_i32 = arith.constant 0 : i32
    %c0_i32_0 = arith.constant 0 : i32
    %c0_i32_1 = arith.constant 0 : i32
    return %c0_i32, %c0_i32_0 : i32, i32
  }
  func.func @transform_10(%arg0: i32) -> (i32, i32) {
    %c0_i32 = arith.constant 0 : i32
    %c0_i32_0 = arith.constant 0 : i32
    return %arg0, %c0_i32 : i32, i32
  }
}

</mosaic_0001>

<llo_original>
// kernel: tpu_custom_call.1
$region0: #{tpu_custom_call.1}
  #allocation0 [shape = 'u32[]', space=smem, size = 0x4, offset = 0x4, fixed_abs, tag = 'smem constant byte address 0x4 - core index']
  #allocation1 [shape = 'u32[72,128]{1,0:T(1,128)}', space=vmem, size = 0x9000, scoped, tag = 'internal scratch']
  #allocation2 [shape = 'f32[1]{0:T(128)S(6)}', space=smem, size = 0x200, scoped, tag = 'scoped memory for tpu_custom_call.1']
  #allocation3 [shape = 'f32[1]{0:T(128)S(6)}', space=smem, size = 0x200, scoped, tag = 'scoped memory for tpu_custom_call.1']
  %s0 = inlined_call_operand.<no memory space> [shape: f32[1], index: 0, kind: input, shape index: {}]
  %s1 = inlined_call_operand.<no memory space> [shape: f32[1], index: 1, kind: input, shape index: {}]
  %s2 = inlined_call_operand.vmem [shape: f32[8,16], index: 2, kind: input, shape index: {}]
  %s3 = inlined_call_operand.vmem [shape: f32[8,8], index: 3, kind: input, shape index: {}]
  %s4 = inlined_call_operand.vmem [shape: bf16[16,256], index: 4, kind: input, shape index: {}]
  %s5 = inlined_call_operand.vmem [shape: f32[1,256], index: 5, kind: input, shape index: {}]
  %s6 = inlined_call_operand.hbm [shape: bf16[256,256], index: 6, kind: input, shape index: {}]
  %s7 = inlined_call_operand.vmem [shape: f32[1,256], index: 7, kind: input, shape index: {}]
  %s8 = inlined_call_operand.vmem [shape: bf16[256,16], index: 8, kind: input, shape index: {}]
  %s9 = inlined_call_operand.vmem [shape: f32[1,16], index: 9, kind: input, shape index: {}]
  %s10 = inlined_call_operand.hbm [shape: f32[8,128], index: 10, kind: output, shape index: {}]
  %s11 = sld [smem:[#allocation0]]
  $region54: #{tpu_custom_call.1} parent=0
    _
  %s13 = ssub.s32 1, %s11
  %s14 = scalar_select 0, %s13, %s11
  %15 = sst [smem:[#allocation2]] %s0
  %16 = sst [smem:[#allocation3]] %s1
  $region1: #{tpu_custom_call.1} parent=0
    #allocation4 [shape = 'u8[131072]{0}', space=vmem, size = 0x20000, scoped, tag = 'input window, operand 6, single buffered']
    #allocation5 [shape = 's32[1]{0}', space=sflag, size = 0x4, scoped, tag = 'scoped memory for tpu_custom_call.1']
    #allocation6 [shape = 's32[1]{0}', space=sflag, size = 0x4, scoped, tag = 'scoped memory for tpu_custom_call.1']
    #allocation7 [shape = 'u8[4096]{0}', space=vmem, size = 0x1000, scoped, tag = 'output window, operand 0, single buffered']
    %17 = vsyncpa [#allocation5], 0
    %18 = vsyncpa [#allocation6], 0
    // Predicated region
    $region2: #{tpu_custom_call.1} parent=1 // pred_check
      _
    $region3: #{tpu_custom_call.1} parent=1 // pred_check_branch
      %20 = sbr.rel (0) target = $region5
    $region4: #{tpu_custom_call.1} parent=1 // pred_region
      _
    $region5: #{tpu_custom_call.1} parent=1 // pred_fallthru
      _
    // Predicated region
    $region6: #{tpu_custom_call.1} parent=1 // pred_check
      _
    $region7: #{tpu_custom_call.1} parent=1 // pred_check_branch
      %22 = sbr.rel (0) target = $region9
    $region8: #{tpu_custom_call.1} parent=1 // pred_region
      _
    $region9: #{tpu_custom_call.1} parent=1 // pred_fallthru
      _
    // Predicated region
    $region10: #{tpu_custom_call.1} parent=1 // pred_check
      _
    $region11: #{tpu_custom_call.1} parent=1 // pred_check_branch
      %24 = sbr.rel (0) target = $region13
    $region12: #{tpu_custom_call.1} parent=1 // pred_region
      _
    $region13: #{tpu_custom_call.1} parent=1 // pred_fallthru
      _
    // Predicated region
    $region14: #{tpu_custom_call.1} parent=1 // pred_check
      _
    $region15: #{tpu_custom_call.1} parent=1 // pred_check_branch
      %26 = sbr.rel (0) target = $region17
    $region16: #{tpu_custom_call.1} parent=1 // pred_region
      _
    $region17: #{tpu_custom_call.1} parent=1 // pred_fallthru
      _
    // Predicated region
    $region18: #{tpu_custom_call.1} parent=1 // pred_check
      _
    $region19: #{tpu_custom_call.1} parent=1 // pred_check_branch
      %28 = sbr.rel (0) target = $region21
    $region20: #{tpu_custom_call.1} parent=1 // pred_region
      _
    $region21: #{tpu_custom_call.1} parent=1 // pred_fallthru
      _
    // Predicated region
    $region22: #{tpu_custom_call.1} parent=1 // pred_check
      _
    $region23: #{tpu_custom_call.1} parent=1 // pred_check_branch
      %30 = sbr.rel (0) target = $region25
    $region24: #{tpu_custom_call.1} parent=1 // pred_region
      _
    $region25: #{tpu_custom_call.1} parent=1 // pred_fallthru
      _
    // Predicated region
    $region26: #{tpu_custom_call.1} parent=1 // pred_check
      _
    $region27: #{tpu_custom_call.1} parent=1 // pred_check_branch
      %32 = sbr.rel (0) target = $region29
    $region28: #{tpu_custom_call.1} parent=1 // pred_region
      %34 = vsyncadd [#allocation5], 0
      %s35 = sshll.u32 %s6, 4
      %s36 = int_to_ptr.hbm [resolvable:$true] %s35
      %s37 = sshll.u32 [#allocation4], 4
      %s38 = int_to_ptr.vmem [resolvable:$true] %s37
      %43 = dma.hbm_to_vmem [thread:$0]  %s36, 4096, %s38, [#allocation5], 128, 128, 8
    $region29: #{tpu_custom_call.1} parent=1 // pred_fallthru
      _
    // Predicated region
    $region30: #{tpu_custom_call.1} parent=1 // pred_check
      _
    $region31: #{tpu_custom_call.1} parent=1 // pred_check_branch
      %45 = sbr.rel (0) target = $region33
    $region32: #{tpu_custom_call.1} parent=1 // pred_region
      _
    $region33: #{tpu_custom_call.1} parent=1 // pred_fallthru
      _
    // Predicated region
    $region34: #{tpu_custom_call.1} parent=1 // pred_check
      _
    $region35: #{tpu_custom_call.1} parent=1 // pred_check_branch
      %47 = sbr.rel (0) target = $region37
    $region36: #{tpu_custom_call.1} parent=1 // pred_region
      _
    $region37: #{tpu_custom_call.1} parent=1 // pred_fallthru
      _
    // Predicated region
    $region38: #{tpu_custom_call.1} parent=1 // pred_check
      _
    $region39: #{tpu_custom_call.1} parent=1 // pred_check_branch
      %49 = sbr.rel (0) target = $region41
    $region40: #{tpu_custom_call.1} parent=1 // pred_region
      _
    $region41: #{tpu_custom_call.1} parent=1 // pred_fallthru
      _
    // Predicated region
    $region42: #{tpu_custom_call.1} parent=1 // pred_check
      _
    $region43: #{tpu_custom_call.1} parent=1 // pred_check_branch
      %51 = sbr.rel (0) target = $region45
    $region44: #{tpu_custom_call.1} parent=1 // pred_region
      %53 = dma.done [#allocation5], 4096
    $region45: #{tpu_custom_call.1} parent=1 // pred_fallthru
      _
    %v55 = vld [vmem:[%s2] sm:$0xff]
    %v56 = vpack.c.bf16 %v55, %v55
    %v57 = vld [vmem:[%s4] sm:$0xff]
    %v58 = vld [vmem:[%s4 + $0x8] sm:$0xff]
    %v59 = vld [vmem:[%s5] sm:$0x3]
    %v61 = vperm.slane %v59, 0
    %v62 = vperm.slane %v59, 1
    %v67 = vunpack.c.l.b16 %v57
    %v68 = vunpack.c.h.b16 %v57
    %v69 = vunpack.c.l.b16 %v58
    %v70 = vunpack.c.h.b16 %v58
    %v71 = vpack.c.b16 %v69, %v67
    %v72 = vpack.c.b16 %v70, %v68
    %vm75 = vcmask 130048
    %v77 = vsel %vm75, %v56, 0
    %79 = vmatpush.bf16.msra.mxu0 0
    %80 = vmatpush.bf16.msra.mxu0 0
    %81 = vmatpush.bf16.msra.mxu0 0
    %82 = vmatpush.bf16.msra.mxu0 0
    %83 = vmatpush.bf16.msra.mxu0 0
    %84 = vmatpush.bf16.msra.mxu0 0
    %85 = vmatpush.bf16.msra.mxu0 0
    %86 = vmatpush.bf16.msra.mxu0 %v71
    %87 = vmatmul.bf16.gmra.mxu0 %v77
    %v88 = vpop.f32.mrf.mxu0
    %v89 = vadd.f32 %v61, %v88
    %v90 = vpop.f32.mrf.mxu0
    %91 = vdwg.mxu0
    %92 = vmatpush.bf16.msra.mxu0 0
    %93 = vmatpush.bf16.msra.mxu0 0
    %94 = vmatpush.bf16.msra.mxu0 0
    %95 = vmatpush.bf16.msra.mxu0 0
    %96 = vmatpush.bf16.msra.mxu0 0
    %97 = vmatpush.bf16.msra.mxu0 0
    %98 = vmatpush.bf16.msra.mxu0 0
    %99 = vmatpush.bf16.msra.mxu0 %v72
    %100 = vmatmul.bf16.gmra.mxu0 %v77
    %v101 = vpop.f32.mrf.mxu0
    %v102 = vadd.f32 %v62, %v101
    %v103 = vpop.f32.mrf.mxu0
    %104 = vdwg.mxu0
    %v105 = vmax.f32 %v89, 0.0
    %v106 = vmax.f32 %v102, 0.0
    %v107 = vpack.c.bf16 %v105, %v105
    %v108 = vpack.c.bf16 %v106, %v106
    %v109 = vld [vmem:[#allocation4] sm:$0xff]
    %v110 = vld [vmem:[#allocation4 + $0x8] sm:$0xff]
    %v111 = vld [vmem:[#allocation4 + $0x10] sm:$0xff]
    %v112 = vld [vmem:[#allocation4 + $0x18] sm:$0xff]
    %v113 = vld [vmem:[#allocation4 + $0x20] sm:$0xff]
    %v114 = vld [vmem:[#allocation4 + $0x28] sm:$0xff]
    %v115 = vld [vmem:[#allocation4 + $0x30] sm:$0xff]
    %v116 = vld [vmem:[#allocation4 + $0x38] sm:$0xff]
    %v117 = vld [vmem:[#allocation4 + $0x40] sm:$0xff]
    %v118 = vld [vmem:[#allocation4 + $0x48] sm:$0xff]
    %v119 = vld [vmem:[#allocation4 + $0x50] sm:$0xff]
    %v120 = vld [vmem:[#allocation4 + $0x58] sm:$0xff]
    %v121 = vld [vmem:[#allocation4 + $0x60] sm:$0xff]
    %v122 = vld [vmem:[#allocation4 + $0x68] sm:$0xff]
    %v123 = vld [vmem:[#allocation4 + $0x70] sm:$0xff]
    %v124 = vld [vmem:[#allocation4 + $0x78] sm:$0xff]
    %v125 = vld [vmem:[#allocation4 + $0x80] sm:$0xff]
    %v126 = vld [vmem:[#allocation4 + $0x88] sm:$0xff]
    %v127 = vld [vmem:[#allocation4 + $0x90] sm:$0xff]
    %v128 = vld [vmem:[#allocation4 + $0x98] sm:$0xff]
    %v129 = vld [vmem:[#allocation4 + $0xa0] sm:$0xff]
    %v130 = vld [vmem:[#allocation4 + $0xa8] sm:$0xff]
    %v131 = vld [vmem:[#allocation4 + $0xb0] sm:$0xff]
    %v132 = vld [vmem:[#allocation4 + $0xb8] sm:$0xff]
    %v133 = vld [vmem:[#allocation4 + $0xc0] sm:$0xff]
    %v134 = vld [vmem:[#allocation4 + $0xc8] sm:$0xff]
    %v135 = vld [vmem:[#allocation4 + $0xd0] sm:$0xff]
    %v136 = vld [vmem:[#allocation4 + $0xd8] sm:$0xff]
    %v137 = vld [vmem:[#allocation4 + $0xe0] sm:$0xff]
    %v138 = vld [vmem:[#allocation4 + $0xe8] sm:$0xff]
    %v139 = vld [vmem:[#allocation4 + $0xf0] sm:$0xff]
    %v140 = vld [vmem:[#allocation4 + $0xf8] sm:$0xff]
    %v141 = vld [vmem:[%s7] sm:$0x3]
    %v143 = vperm.slane %v141, 0
    %v144 = vperm.slane %v141, 1
    %v179 = vunpack.c.l.b16 %v109
    %v180 = vunpack.c.h.b16 %v109
    %v181 = vunpack.c.l.b16 %v110
    %v182 = vunpack.c.h.b16 %v110
    %v183 = vunpack.c.l.b16 %v111
    %v184 = vunpack.c.h.b16 %v111
    %v185 = vunpack.c.l.b16 %v112
    %v186 = vunpack.c.h.b16 %v112
    %v187 = vunpack.c.l.b16 %v113
    %v188 = vunpack.c.h.b16 %v113
    %v189 = vunpack.c.l.b16 %v114
    %v190 = vunpack.c.h.b16 %v114
    %v191 = vunpack.c.l.b16 %v115
    %v192 = vunpack.c.h.b16 %v115
    %v193 = vunpack.c.l.b16 %v116
    %v194 = vunpack.c.h.b16 %v116
    %v195 = vunpack.c.l.b16 %v117
    %v196 = vunpack.c.h.b16 %v117
    %v197 = vunpack.c.l.b16 %v118
    %v198 = vunpack.c.h.b16 %v118
    %v199 = vunpack.c.l.b16 %v119
    %v200 = vunpack.c.h.b16 %v119
    %v201 = vunpack.c.l.b16 %v120
    %v202 = vunpack.c.h.b16 %v120
    %v203 = vunpack.c.l.b16 %v121
    %v204 = vunpack.c.h.b16 %v121
    %v205 = vunpack.c.l.b16 %v122
    %v206 = vunpack.c.h.b16 %v122
    %v207 = vunpack.c.l.b16 %v123
    %v208 = vunpack.c.h.b16 %v123
    %v209 = vunpack.c.l.b16 %v124
    %v210 = vunpack.c.h.b16 %v124
    %v211 = vunpack.c.l.b16 %v125
    %v212 = vunpack.c.h.b16 %v125
    %v213 = vunpack.c.l.b16 %v126
    %v214 = vunpack.c.h.b16 %v126
    %v215 = vunpack.c.l.b16 %v127
    %v216 = vunpack.c.h.b16 %v127
    %v217 = vunpack.c.l.b16 %v128
    %v218 = vunpack.c.h.b16 %v128
    %v219 = vunpack.c.l.b16 %v129
    %v220 = vunpack.c.h.b16 %v129
    %v221 = vunpack.c.l.b16 %v130
    %v222 = vunpack.c.h.b16 %v130
    %v223 = vunpack.c.l.b16 %v131
    %v224 = vunpack.c.h.b16 %v131
    %v225 = vunpack.c.l.b16 %v132
    %v226 = vunpack.c.h.b16 %v132
    %v227 = vunpack.c.l.b16 %v133
    %v228 = vunpack.c.h.b16 %v133
    %v229 = vunpack.c.l.b16 %v134
    %v230 = vunpack.c.h.b16 %v134
    %v231 = vunpack.c.l.b16 %v135
    %v232 = vunpack.c.h.b16 %v135
    %v233 = vunpack.c.l.b16 %v136
    %v234 = vunpack.c.h.b16 %v136
    %v235 = vunpack.c.l.b16 %v137
    %v236 = vunpack.c.h.b16 %v137
    %v237 = vunpack.c.l.b16 %v138
    %v238 = vunpack.c.h.b16 %v138
    %v239 = vunpack.c.l.b16 %v139
    %v240 = vunpack.c.h.b16 %v139
    %v241 = vunpack.c.l.b16 %v140
    %v242 = vunpack.c.h.b16 %v140
    %v243 = vpack.c.b16 %v181, %v179
    %v244 = vpack.c.b16 %v182, %v180
    %v245 = vpack.c.b16 %v185, %v183
    %v246 = vpack.c.b16 %v186, %v184
    %v247 = vpack.c.b16 %v189, %v187
    %v248 = vpack.c.b16 %v190, %v188
    %v249 = vpack.c.b16 %v193, %v191
    %v250 = vpack.c.b16 %v194, %v192
    %v251 = vpack.c.b16 %v197, %v195
    %v252 = vpack.c.b16 %v198, %v196
    %v253 = vpack.c.b16 %v201, %v199
    %v254 = vpack.c.b16 %v202, %v200
    %v255 = vpack.c.b16 %v205, %v203
    %v256 = vpack.c.b16 %v206, %v204
    %v257 = vpack.c.b16 %v209, %v207
    %v258 = vpack.c.b16 %v210, %v208
    %v259 = vpack.c.b16 %v213, %v211
    %v260 = vpack.c.b16 %v214, %v212
    %v261 = vpack.c.b16 %v217, %v215
    %v262 = vpack.c.b16 %v218, %v216
    %v263 = vpack.c.b16 %v221, %v219
    %v264 = vpack.c.b16 %v222, %v220
    %v265 = vpack.c.b16 %v225, %v223
    %v266 = vpack.c.b16 %v226, %v224
    %v267 = vpack.c.b16 %v229, %v227
    %v268 = vpack.c.b16 %v230, %v228
    %v269 = vpack.c.b16 %v233, %v231
    %v270 = vpack.c.b16 %v234, %v232
    %v271 = vpack.c.b16 %v237, %v235
    %v272 = vpack.c.b16 %v238, %v236
    %v273 = vpack.c.b16 %v241, %v239
    %v274 = vpack.c.b16 %v242, %v240
    %307 = vmatpush.bf16.msra.mxu0 %v257
    %308 = vmatpush.bf16.msra.mxu0 %v255
    %309 = vmatpush.bf16.msra.mxu0 %v253
    %310 = vmatpush.bf16.msra.mxu0 %v251
    %311 = vmatpush.bf16.msra.mxu0 %v249
    %312 = vmatpush.bf16.msra.mxu0 %v247
    %313 = vmatpush.bf16.msra.mxu0 %v245
    %314 = vmatpush.bf16.msra.mxu0 %v243
    %315 = vmatmul.bf16.gmra.mxu0 %v107
    %v316 = vpop.f32.mrf.mxu0
    %v317 = vadd.f32 %v143, %v316
    %v318 = vpop.f32.mrf.mxu0
    %319 = vdwg.mxu0
    %320 = vmatpush.bf16.msra.mxu0 %v273
    %321 = vmatpush.bf16.msra.mxu0 %v271
    %322 = vmatpush.bf16.msra.mxu0 %v269
    %323 = vmatpush.bf16.msra.mxu0 %v267
    %324 = vmatpush.bf16.msra.mxu0 %v265
    %325 = vmatpush.bf16.msra.mxu0 %v263
    %326 = vmatpush.bf16.msra.mxu0 %v261
    %327 = vmatpush.bf16.msra.mxu0 %v259
    %328 = vmatmul.bf16.gmra.mxu0 %v108
    %v329 = vpop.f32.mrf.mxu0
    %v330 = vadd.f32 %v317, %v329
    %v331 = vpop.f32.mrf.mxu0
    %332 = vdwg.mxu0
    %333 = vmatpush.bf16.msra.mxu0 %v258
    %334 = vmatpush.bf16.msra.mxu0 %v256
    %335 = vmatpush.bf16.msra.mxu0 %v254
    %336 = vmatpush.bf16.msra.mxu0 %v252
    %337 = vmatpush.bf16.msra.mxu0 %v250
    %338 = vmatpush.bf16.msra.mxu0 %v248
    %339 = vmatpush.bf16.msra.mxu0 %v246
    %340 = vmatpush.bf16.msra.mxu0 %v244
    %341 = vmatmul.bf16.gmra.mxu0 %v107
    %v342 = vpop.f32.mrf.mxu0
    %v343 = vadd.f32 %v144, %v342
    %v344 = vpop.f32.mrf.mxu0
    %345 = vdwg.mxu0
    %346 = vmatpush.bf16.msra.mxu0 %v274
    %347 = vmatpush.bf16.msra.mxu0 %v272
    %348 = vmatpush.bf16.msra.mxu0 %v270
    %349 = vmatpush.bf16.msra.mxu0 %v268
    %350 = vmatpush.bf16.msra.mxu0 %v266
    %351 = vmatpush.bf16.msra.mxu0 %v264
    %352 = vmatpush.bf16.msra.mxu0 %v262
    %353 = vmatpush.bf16.msra.mxu0 %v260
    %354 = vmatmul.bf16.gmra.mxu0 %v108
    %v355 = vpop.f32.mrf.mxu0
    %v356 = vadd.f32 %v343, %v355
    %v357 = vpop.f32.mrf.mxu0
    %358 = vdwg.mxu0
    %v359 = vmax.f32 %v330, 0.0
    %v360 = vmax.f32 %v356, 0.0
    %v361 = vpack.c.bf16 %v359, %v359
    %v362 = vpack.c.bf16 %v360, %v360
    %v363 = vld [vmem:[%s8] sm:$0xf]
    %v364 = vld [vmem:[%s8 + $0x4] sm:$0xf]
    %v365 = vld [vmem:[%s8 + $0x8] sm:$0xf]
    %v366 = vld [vmem:[%s8 + $0xc] sm:$0xf]
    %v367 = vld [vmem:[%s8 + $0x10] sm:$0xf]
    %v368 = vld [vmem:[%s8 + $0x14] sm:$0xf]
    %v369 = vld [vmem:[%s8 + $0x18] sm:$0xf]
    %v370 = vld [vmem:[%s8 + $0x1c] sm:$0xf]
    %v371 = vld [vmem:[%s8 + $0x20] sm:$0xf]
    %v372 = vld [vmem:[%s8 + $0x24] sm:$0xf]
    %v373 = vld [vmem:[%s8 + $0x28] sm:$0xf]
    %v374 = vld [vmem:[%s8 + $0x2c] sm:$0xf]
    %v375 = vld [vmem:[%s8 + $0x30] sm:$0xf]
    %v376 = vld [vmem:[%s8 + $0x34] sm:$0xf]
    %v377 = vld [vmem:[%s8 + $0x38] sm:$0xf]
    %v378 = vld [vmem:[%s8 + $0x3c] sm:$0xf]
    %v379 = vld [vmem:[%s8 + $0x40] sm:$0xf]
    %v380 = vld [vmem:[%s8 + $0x44] sm:$0xf]
    %v381 = vld [vmem:[%s8 + $0x48] sm:$0xf]
    %v382 = vld [vmem:[%s8 + $0x4c] sm:$0xf]
    %v383 = vld [vmem:[%s8 + $0x50] sm:$0xf]
    %v384 = vld [vmem:[%s8 + $0x54] sm:$0xf]
    %v385 = vld [vmem:[%s8 + $0x58] sm:$0xf]
    %v386 = vld [vmem:[%s8 + $0x5c] sm:$0xf]
    %v387 = vld [vmem:[%s8 + $0x60] sm:$0xf]
    %v388 = vld [vmem:[%s8 + $0x64] sm:$0xf]
    %v389 = vld [vmem:[%s8 + $0x68] sm:$0xf]
    %v390 = vld [vmem:[%s8 + $0x6c] sm:$0xf]
    %v391 = vld [vmem:[%s8 + $0x70] sm:$0xf]
    %v392 = vld [vmem:[%s8 + $0x74] sm:$0xf]
    %v393 = vld [vmem:[%s8 + $0x78] sm:$0xf]
    %v394 = vld [vmem:[%s8 + $0x7c] sm:$0xf]
    %v395 = vld [vmem:[%s9] sm:$0x1]
    %v397 = vperm.slane %v395, 0
    %v431 = vunpack.c.l.b16 %v363
    %v432 = vunpack.c.l.b16 %v364
    %v433 = vunpack.c.l.b16 %v365
    %v434 = vunpack.c.l.b16 %v366
    %v435 = vunpack.c.l.b16 %v367
    %v436 = vunpack.c.l.b16 %v368
    %v437 = vunpack.c.l.b16 %v369
    %v438 = vunpack.c.l.b16 %v370
    %v439 = vunpack.c.l.b16 %v371
    %v440 = vunpack.c.l.b16 %v372
    %v441 = vunpack.c.l.b16 %v373
    %v442 = vunpack.c.l.b16 %v374
    %v443 = vunpack.c.l.b16 %v375
    %v444 = vunpack.c.l.b16 %v376
    %v445 = vunpack.c.l.b16 %v377
    %v446 = vunpack.c.l.b16 %v378
    %v447 = vunpack.c.l.b16 %v379
    %v448 = vunpack.c.l.b16 %v380
    %v449 = vunpack.c.l.b16 %v381
    %v450 = vunpack.c.l.b16 %v382
    %v451 = vunpack.c.l.b16 %v383
    %v452 = vunpack.c.l.b16 %v384
    %v453 = vunpack.c.l.b16 %v385
    %v454 = vunpack.c.l.b16 %v386
    %v455 = vunpack.c.l.b16 %v387
    %v456 = vunpack.c.l.b16 %v388
    %v457 = vunpack.c.l.b16 %v389
    %v458 = vunpack.c.l.b16 %v390
    %v459 = vunpack.c.l.b16 %v391
    %v460 = vunpack.c.l.b16 %v392
    %v461 = vunpack.c.l.b16 %v393
    %v462 = vunpack.c.l.b16 %v394
    %v463 = vpack.c.b16 %v432, %v431
    %v464 = vpack.c.b16 %v434, %v433
    %v465 = vpack.c.b16 %v436, %v435
    %v466 = vpack.c.b16 %v438, %v437
    %v467 = vpack.c.b16 %v440, %v439
    %v468 = vpack.c.b16 %v442, %v441
    %v469 = vpack.c.b16 %v444, %v443
    %v470 = vpack.c.b16 %v446, %v445
    %v471 = vpack.c.b16 %v448, %v447
    %v472 = vpack.c.b16 %v450, %v449
    %v473 = vpack.c.b16 %v452, %v451
    %v474 = vpack.c.b16 %v454, %v453
    %v475 = vpack.c.b16 %v456, %v455
    %v476 = vpack.c.b16 %v458, %v457
    %v477 = vpack.c.b16 %v460, %v459
    %v478 = vpack.c.b16 %v462, %v461
    %495 = vmatpush.bf16.msra.mxu0 %v470
    %496 = vmatpush.bf16.msra.mxu0 %v469
    %497 = vmatpush.bf16.msra.mxu0 %v468
    %498 = vmatpush.bf16.msra.mxu0 %v467
    %499 = vmatpush.bf16.msra.mxu0 %v466
    %500 = vmatpush.bf16.msra.mxu0 %v465
    %501 = vmatpush.bf16.msra.mxu0 %v464
    %502 = vmatpush.bf16.msra.mxu0 %v463
    %503 = vmatmul.bf16.gmra.mxu0 %v361
    %v504 = vpop.f32.mrf.mxu0
    %v505 = vadd.f32 %v397, %v504
    %v506 = vpop.f32.mrf.mxu0
    %507 = vdwg.mxu0
    %508 = vmatpush.bf16.msra.mxu0 %v478
    %509 = vmatpush.bf16.msra.mxu0 %v477
    %510 = vmatpush.bf16.msra.mxu0 %v476
    %511 = vmatpush.bf16.msra.mxu0 %v475
    %512 = vmatpush.bf16.msra.mxu0 %v474
    %513 = vmatpush.bf16.msra.mxu0 %v473
    %514 = vmatpush.bf16.msra.mxu0 %v472
    %515 = vmatpush.bf16.msra.mxu0 %v471
    %516 = vmatmul.bf16.gmra.mxu0 %v362
    %v517 = vpop.f32.mrf.mxu0
    %v518 = vadd.f32 %v505, %v517
    %v519 = vpop.f32.mrf.mxu0
    %520 = vdwg.mxu0
    %s521 = sld [smem:[#allocation2]]
    %v522 = vstv %s521
    %v523 = vmul.f32 %v522, %v518
    %s524 = sld [smem:[#allocation3]]
    %v525 = vstv %s524
    %v526 = vadd.f32 %v523, %v525
    %v527 = vmax.f32 %v526, -20.0
    %v528 = vmin.f32 %v527, 2.0
    %v529 = vmul.f32 %v528, 1.442695
    %v530 = vpow.pop %v529
    %v531 = vld [vmem:[%s3] sm:$0xff]
    %533 = vrot.lane.b32.xlu0 %v531, 8
    %v534 = vpop.permute.xlu0 %533
    %v536 = vmul.f32 %v530, %v534
    %538 = vrot.lane.b32.xlu0 %v536, 120
    %v539 = vpop.permute.xlu0 %538
    %v541 = vadd.f32 %v518, %v539
    %v542 = vtanh.pop %v541
    %v543 = vmul.f32 %v531, -0.5
    %v544 = vmul.f32 %v543, %v531
    %546 = vrot.lane.b32.xlu0 %v528, 120
    %v547 = vpop.permute.xlu0 %546
    %v549 = vsub.f32 %v544, %v547
    %v550 = vsub.f32 %v549, 0.9189385
    %v551 = vmul.f32 %v541, -2.0
    %v552 = vmax.f32 %v551, 0.0
    %v553 = vand.u32 2147483647, %v551
    %v554 = vsub.f32 0.0, %v553
    %v555 = vmul.f32 %v554, 1.442695
    %v556 = vpow.pop %v555
    %v557 = vadd.f32 %v556, 1.0
    %v558 = vlog2.pop %v557
    %v559 = vmul.f32 %v558, 0.6931472
    %v560 = vmul.f32 -0.5, %v556
    %v561 = vadd.f32 %v560, 1.0
    %v562 = vmul.f32 %v561, %v556
    %v563 = vand.u32 2147483647, %v556
    %vm564 = vcmp.lt.f32.partialorder %v563, 0.0004427343
    %v565 = vsel %vm564, %v562, %v559
    %v566 = vadd.f32 %v552, %v565
    %v567 = vsub.f32 0.6931472, %v541
    %v568 = vsub.f32 %v567, %v566
    %v569 = vmul.f32 %v568, 2.0
    %v570 = vsub.f32 %v550, %v569
    %vm571 = vcmask 64512
    %v572 = vsel %vm571, %v570, 0.0
    %573 = vadd.xlane.f32.xlu0 %v572
    %v574 = vpop.xlane.xlu0 %573
    %575 = vst.msk [vmem:[#allocation7] sm:$0xff] %vm571, %v542
    %vm576 = vcmask 72768
    %577 = vst.msk [vmem:[#allocation7] sm:$0xff] %vm576, %v574
    // Predicated region
    $region46: #{tpu_custom_call.1} parent=1 // pred_check
      _
    $region47: #{tpu_custom_call.1} parent=1 // pred_check_branch
      %579 = sbr.rel (0) target = $region49
    $region48: #{tpu_custom_call.1} parent=1 // pred_region
      %581 = vsyncadd [#allocation6], 0
      %s583 = sshll.u32 [#allocation7], 4
      %s584 = int_to_ptr.vmem [resolvable:$true] %s583
      %s585 = sshll.u32 %s10, 4
      %s586 = int_to_ptr.hbm [resolvable:$true] %s585
      %588 = dma.vmem_to_hbm [thread:$0]  %s584, 128, %s586, [#allocation6]
    $region49: #{tpu_custom_call.1} parent=1 // pred_fallthru
      _
    // Predicated region
    $region50: #{tpu_custom_call.1} parent=1 // pred_check
      _
    $region51: #{tpu_custom_call.1} parent=1 // pred_check_branch
      %590 = sbr.rel (0) target = $region53
    $region52: #{tpu_custom_call.1} parent=1 // pred_region
      %592 = dma.done [#allocation6], 128
    $region53: #{tpu_custom_call.1} parent=1 // pred_fallthru
      _
    %593 = vsyncpa [#allocation5], 1
    %594 = vsyncpa [#allocation6], 1

</llo_original>
